<compile_context>
chip_gen: v6e
topology: v6e:2x2x1
jax: 0.10.0
libtpu: 0.0.40
codegen_flags: <defaults>
</compile_context>

<pallas_src>
import functools

import jax
import jax.numpy as jnp
from jax.experimental import pallas as pl
from jax.experimental.pallas import tpu as pltpu


def gated_prompt_kernel(im_ref, wcat_ref, bcat_ref, w2_ref, b2_ref, ctx_ref,
                        out_ref, ghsum_ref, *, batch, tb, hidden):
    step = pl.program_id(0)

    @pl.when(step == 0)
    def _init():
        ghsum_ref[...] = jnp.zeros_like(ghsum_ref)

    im = im_ref[...]                                                    # (TB, D) bf16/f32

    # Mask rows of a partial last block past the true batch size (static check:
    # this branch is not even traced when TB divides B, e.g. in the demo).
    if batch % tb != 0:
        row = step * tb + jax.lax.broadcasted_iota(jnp.int32, (tb, 1), 0)
        valid = row < batch
        im = jnp.where(valid, im, 0.0)

    # ONE lane-dense MXU pass per step: columns [0:H) = modulation hidden
    # pre-activations, column H = gate pre-activation, columns (H:Np) = zero pad.
    # bf16 operands, f32 accumulation; everything after the dot stays f32.
    z = jnp.dot(im, wcat_ref[...], preferred_element_type=jnp.float32) + bcat_ref[...]
    gate = jax.nn.sigmoid(z[:, hidden:hidden + 1])                      # (TB, 1) f32
    if batch % tb != 0:
        gate = jnp.where(valid, gate, 0.0)                              # pad rows contribute 0

    h = jnp.maximum(z, 0.0)                                             # (TB, Np); pad cols exactly 0
    # Fold the gate-sum accumulator into lane H: replace the (discarded)
    # relu(z_gate) column with 1 so one sublane reduce yields
    #   [ sum_b g_b*h_b  |  sum_b g_b  |  0 ... ].
    col = jax.lax.broadcasted_iota(jnp.int32, (1, z.shape[1]), 1)
    hg = jnp.where(col == hidden, 1.0, h)
    ghsum_ref[...] += jnp.sum(gate * hg, axis=0, keepdims=True)         # (1, Np)

    # NOTE: writing out_ref only on the last step is correct only because the
    # output index_map is constant and this grid axis is "arbitrary".  Do NOT
    # flip it to "parallel" (or split across v7x cores) without per-core partials.
    @pl.when(step == pl.num_programs(0) - 1)
    def _finalize():
        inv_b = 1.0 / batch
        acc = ghsum_ref[...]                                            # (1, Np) f32
        gsum = acc[:, hidden:hidden + 1]                                # (1, 1)  = sum_b g_b
        # Hoisted second matmul: W2 rows for the gate/pad columns are zero, so
        # lane H (the gate sum) and the pad lanes contribute exactly 0.
        gm = (jnp.dot(acc, w2_ref[...], preferred_element_type=jnp.float32)
              + gsum * b2_ref[...]) * inv_b                             # (1, D)
        gbar = gsum * inv_b                                             # (1, 1)
        # Lane-dense AXPY over the resident ctx tile.
        out_ref[...] = gm + (1.0 - gbar) * ctx_ref[...]                 # (PT, D)


def pack_params(params, matmul_dtype=jnp.bfloat16):
    """One-time packing of the gate + modulation weights (do this offline,
    outside the per-call / serving path)."""
    D, H = params["w1"].shape
    Np = max(128, ((H + 1 + 127) // 128) * 128)       # lane-aligned fused width
    wcat = (jnp.zeros((D, Np), jnp.float32)
            .at[:, :H].set(params["w1"])
            .at[:, H:H + 1].set(params["wg"]))
    bcat = (jnp.zeros((1, Np), jnp.float32)
            .at[:, :H].set(params["b1"])
            .at[:, H:H + 1].set(params["bg"]))
    w2p = jnp.zeros((Np, D), jnp.float32).at[:H, :].set(params["w2"])   # zero rows for gate/pad cols
    return dict(
        wcat=wcat.astype(matmul_dtype),   # hot-loop matmul operand -> bf16
        bcat=bcat,                        # f32 (elementwise path)
        w2p=w2p,                          # f32: only used in the tiny finalize matmul
        b2=params["b2"],
        hidden=H,
        n_packed=Np,
        matmul_dtype=matmul_dtype,
    )


def _vmem_limit_bytes(tb, d, np_, pt, mm_itemsize):
    """Conservative scoped-VMEM budget: streamed im (double-buffered) + resident
    blocks (counted double-buffered in case single-buffering is unavailable)."""
    def pad(r, c, s):
        return ((r + 7) // 8) * 8 * ((c + 127) // 128) * 128 * s
    total = (2 * pad(tb, d, mm_itemsize)            # im stream, 2 buffers
             + 2 * (pad(d, np_, mm_itemsize)        # wcat
                    + pad(1, np_, 4)                # bcat
                    + pad(np_, d, 4)                # w2p
                    + pad(1, d, 4)                  # b2
                    + 2 * pad(pt, d, 4))            # ctx + out
             + pad(1, np_, 4))                      # accumulator scratch
    return int(min(max(2 * total + (4 << 20), 32 << 20), 100 << 20))


def gated_prompt_modulator(ctx, im_features, packed, *, max_batch_block=1024):
    """ctx: (1, P, T, D), im_features: (B, D). Returns (1, P, T, D) float32."""
    _, P, T, D = ctx.shape
    B, _ = im_features.shape
    H = packed["hidden"]
    Np = packed["n_packed"]
    PT = P * T
    mm_dtype = packed["matmul_dtype"]
    mm_itemsize = jnp.dtype(mm_dtype).itemsize

    ctx_flat = ctx.reshape(PT, D).astype(jnp.float32)
    im = im_features.astype(mm_dtype)     # halves HBM bytes of the only streamed tensor

    # B-tiled grid: weights + ctx resident (constant index_map), im streamed/pipelined.
    if B <= max_batch_block:
        TB = B                                        # block == full dim -> always legal
    else:
        TB = max(8, (max_batch_block // 8) * 8)       # keep (8,128) tiling constraint
    grid = (pl.cdiv(B, TB),)

    kernel = functools.partial(gated_prompt_kernel, batch=B, tb=TB, hidden=H)
    vmem_limit = _vmem_limit_bytes(TB, D, Np, PT, mm_itemsize)

    def run(single_buffer_resident):
        def resident(shape):
            if single_buffer_resident:
                # Constant-index blocks gain nothing from double-buffering; halve
                # their resident VMEM footprint.
                return pl.BlockSpec(shape, lambda i: (0, 0),
                                    pipeline_mode=pl.Buffered(1))
            return pl.BlockSpec(shape, lambda i: (0, 0))

        return pl.pallas_call(
            kernel,
            out_shape=jax.ShapeDtypeStruct((PT, D), jnp.float32),
            grid_spec=pltpu.PrefetchScalarGridSpec(
                num_scalar_prefetch=0,
                grid=grid,
                in_specs=[
                    pl.BlockSpec((TB, D), lambda i: (i, 0)),   # im_features (streamed over B)
                    resident((D, Np)),                         # packed [W1 | Wg | 0]
                    resident((1, Np)),                         # packed [b1 | bg | 0]
                    resident((Np, D)),                         # zero-row-padded W2
                    resident((1, D)),                          # b2
                    resident((PT, D)),                         # ctx (resident, touched once)
                ],
                out_specs=pl.BlockSpec((PT, D), lambda i: (0, 0)),
                scratch_shapes=[
                    pltpu.VMEM((1, Np), jnp.float32),          # [sum g*h | sum g | 0]
                ],
            ),
            compiler_params=pltpu.CompilerParams(
                dimension_semantics=("arbitrary",),            # accumulator axis: NOT "parallel"
                vmem_limit_bytes=vmem_limit),
        )(im, packed["wcat"], packed["bcat"], packed["w2p"], packed["b2"], ctx_flat)

    if hasattr(pl, "Buffered"):
        try:
            out_flat = run(True)
        except Exception:           # fall back if pipeline_mode=Buffered(1) is rejected
            out_flat = run(False)
    else:
        out_flat = run(False)

    return out_flat.reshape(1, P, T, D)


def reference_forward(ctx, im_features, params):
    """Pure-JAX mirror of the PyTorch forward (for verification)."""
    B, D = im_features.shape
    gate = jax.nn.sigmoid(im_features @ params["wg"] + params["bg"])        # (B,1)
    h = jax.nn.relu(im_features @ params["w1"] + params["b1"])
    mod = h @ params["w2"] + params["b2"]                                   # (B,D)
    gate4 = gate[:, None, None, :]                                          # (B,1,1,1)
    mod4 = mod[:, None, None, :]                                            # (B,1,1,D)
    ctx_e = jnp.broadcast_to(ctx, (B,) + ctx.shape[1:])                     # (B,P,T,D)
    modulated = gate4 * mod4 + (1.0 - gate4) * ctx_e
    return jnp.mean(modulated, axis=0, keepdims=True)                       # (1,P,T,D)


def init_params(key, ctx_dim):
    d4 = ctx_dim // 4
    k = jax.random.split(key, 6)
    s = 0.05
    return {
        "wg": s * jax.random.normal(k[0], (ctx_dim, 1), jnp.float32),
        "bg": s * jax.random.normal(k[1], (1, 1), jnp.float32),
        "w1": s * jax.random.normal(k[2], (ctx_dim, d4), jnp.float32),
        "b1": s * jax.random.normal(k[3], (1, d4), jnp.float32),
        "w2": s * jax.random.normal(k[4], (d4, ctx_dim), jnp.float32),
        "b2": s * jax.random.normal(k[5], (1, ctx_dim), jnp.float32),
    }


if __name__ == "__main__":
    # batch, prompts, tokens, ctx_dim (D=128 keeps everything lane-dense; real CLIP D=768)
    B, P, T, D = 2, 2, 8, 128

    key = jax.random.PRNGKey(0)
    k_ctx, k_im, k_par = jax.random.split(key, 3)

    ctx = jax.random.normal(k_ctx, (1, P, T, D), jnp.float32)
    im_features = jax.random.normal(k_im, (B, D), jnp.float32)
    params = init_params(k_par, D)

    ref = reference_forward(ctx, im_features, params)

    # Exactness check of the factored-mean / hoisted-matmul algorithm (f32 operands).
    packed_f32 = pack_params(params, matmul_dtype=jnp.float32)
    out_f32 = jax.block_until_ready(gated_prompt_modulator(ctx, im_features, packed_f32))
    assert out_f32.shape == (1, P, T, D)
    assert jnp.allclose(out_f32, ref, atol=1e-5, rtol=1e-5), \
        float(jnp.max(jnp.abs(out_f32 - ref)))

    # Performance configuration: bf16 matmul operands, f32 accumulation / elementwise.
    packed_bf16 = pack_params(params, matmul_dtype=jnp.bfloat16)
    out_bf16 = jax.block_until_ready(gated_prompt_modulator(ctx, im_features, packed_bf16))
    assert out_bf16.shape == (1, P, T, D)
    assert jnp.allclose(out_bf16, ref, atol=3e-2, rtol=3e-2), \
        float(jnp.max(jnp.abs(out_bf16 - ref)))

    print("KERNEL_OK")
</pallas_src>

<mosaic_0001>
module attributes {stable_mosaic.version = 11 : i64} {
  func.func @gated_prompt_kernel(%arg0: i32, %arg1: memref<2x128xf32, #tpu.memory_space<vmem>>, %arg2: memref<128x128xf32, #tpu.memory_space<vmem>>, %arg3: memref<1x128xf32, #tpu.memory_space<vmem>>, %arg4: memref<128x128xf32, #tpu.memory_space<vmem>>, %arg5: memref<1x128xf32, #tpu.memory_space<vmem>>, %arg6: memref<16x128xf32, #tpu.memory_space<vmem>>, %arg7: memref<16x128xf32, #tpu.memory_space<vmem>>, %arg8: memref<1x128xf32, #tpu.memory_space<vmem>>) attributes {dimension_semantics = [#tpu.dimension_semantics<arbitrary>], iteration_bounds = array<i64: 1>, scalar_prefetch = 0 : i64, scratch_operands = 1 : i64, tpu.core_type = #tpu.core_type<tc>, window_params = [{transform_indices = @transform_0, window_bounds = array<i64: 2, 128>}, {pipeline_mode = #tpu.pipeline_mode<synchronous>, transform_indices = @transform_1, window_bounds = array<i64: 128, 128>}, {pipeline_mode = #tpu.pipeline_mode<synchronous>, transform_indices = @transform_2, window_bounds = array<i64: 1, 128>}, {pipeline_mode = #tpu.pipeline_mode<synchronous>, transform_indices = @transform_3, window_bounds = array<i64: 128, 128>}, {pipeline_mode = #tpu.pipeline_mode<synchronous>, transform_indices = @transform_4, window_bounds = array<i64: 1, 128>}, {pipeline_mode = #tpu.pipeline_mode<synchronous>, transform_indices = @transform_5, window_bounds = array<i64: 16, 128>}, {pipeline_mode = #tpu.pipeline_mode<synchronous>, transform_indices = @transform_6, window_bounds = array<i64: 16, 128>}]} {
    %c0_i32 = arith.constant 0 : i32
    %0 = arith.cmpi eq, %arg0, %c0_i32 : i32
    %1 = arith.extui %0 : i1 to i32
    %c0_i32_0 = arith.constant 0 : i32
    %2 = arith.cmpi ne, %1, %c0_i32_0 : i32
    scf.if %2 {
      %cst_16 = arith.constant 0.000000e+00 : f32
      %34 = vector.broadcast %cst_16 : f32 to vector<1x128xf32>
      %c0_17 = arith.constant 0 : index
      %c0_18 = arith.constant 0 : index
      %35 = vector.load %arg8[%c0_17, %c0_18] : memref<1x128xf32, #tpu.memory_space<vmem>>, vector<1x128xf32>
      tpu.vector_store %arg8[%c0_17, %c0_18], %34 {strides = array<i32>} : memref<1x128xf32, #tpu.memory_space<vmem>>, vector<1x128xf32>,
    } else {
    }
    %c0 = arith.constant 0 : index
    %c0_1 = arith.constant 0 : index
    %3 = vector.load %arg1[%c0, %c0_1] : memref<2x128xf32, #tpu.memory_space<vmem>>, vector<2x128xf32>
    %c0_2 = arith.constant 0 : index
    %c0_3 = arith.constant 0 : index
    %4 = vector.load %arg2[%c0_2, %c0_3] : memref<128x128xf32, #tpu.memory_space<vmem>>, vector<128x128xf32>
    %cst = arith.constant dense<0.000000e+00> : vector<2x128xf32>
    %5 = tpu.matmul %3, %4, %cst {dimension_numbers = #tpu.dot_dimension_numbers<[1], [0], [0], [1], [0, 0, 1, 1], [], []>} : vector<2x128xf32>, vector<128x128xf32>, vector<2x128xf32> -> vector<2x128xf32>
    %c0_4 = arith.constant 0 : index
    %c0_5 = arith.constant 0 : index
    %6 = vector.load %arg3[%c0_4, %c0_5] : memref<1x128xf32, #tpu.memory_space<vmem>>, vector<1x128xf32>
    %7 = vector.broadcast %6 : vector<1x128xf32> to vector<2x128xf32>
    %8 = arith.addf %5, %7 : vector<2x128xf32>
    %9 = vector.extract_strided_slice %8 {offsets = [0, 32], sizes = [2, 1], strides = [1, 1]} : vector<2x128xf32> to vector<2x1xf32>
    %10 = arith.negf %9 : vector<2x1xf32>
    %11 = math.exp %10 : vector<2x1xf32>
    %cst_6 = arith.constant 1.000000e+00 : f32
    %12 = vector.broadcast %cst_6 : f32 to vector<2x1xf32>
    %13 = arith.addf %12, %11 : vector<2x1xf32>
    %14 = arith.divf %12, %13 : vector<2x1xf32>
    %cst_7 = arith.constant 0.000000e+00 : f32
    %15 = vector.broadcast %cst_7 : f32 to vector<2x128xf32>
    %16 = arith.maximumf %8, %15 : vector<2x128xf32>
    %17 = tpu.iota {dimensions = array<i32: 1>} : vector<1x128xi32>
    %c32_i32 = arith.constant 32 : i32
    %18 = vector.broadcast %c32_i32 : i32 to vector<1x128xi32>
    %19 = arith.cmpi eq, %17, %18 : vector<1x128xi32>
    %cst_8 = arith.constant 1.000000e+00 : f32
    %20 = vector.shape_cast %19 : vector<1x128xi1> to vector<1x128xi1>
    %21 = vector.broadcast %20 : vector<1x128xi1> to vector<2x128xi1>
    %22 = vector.broadcast %cst_8 : f32 to vector<2x128xf32>
    %23 = arith.select %21, %22, %16 : vector<2x128xi1>, vector<2x128xf32>
    %c0_9 = arith.constant 0 : index
    %c0_10 = arith.constant 0 : index
    %24 = vector.load %arg8[%c0_9, %c0_10] : memref<1x128xf32, #tpu.memory_space<vmem>>, vector<1x128xf32>
    %25 = vector.broadcast %14 : vector<2x1xf32> to vector<2x128xf32>
    %26 = arith.mulf %25, %23 : vector<2x128xf32>
    %cst_11 = arith.constant dense<0.000000e+00> : vector<128xf32>
    %27 = vector.multi_reduction <add>, %26, %cst_11 [0] : vector<2x128xf32> to vector<128xf32>
    %28 = vector.shape_cast %27 : vector<128xf32> to vector<1x128xf32>
    %29 = arith.addf %24, %28 : vector<1x128xf32>
    %c0_12 = arith.constant 0 : index
    %c0_13 = arith.constant 0 : index
    %30 = vector.load %arg8[%c0_12, %c0_13] : memref<1x128xf32, #tpu.memory_space<vmem>>, vector<1x128xf32>
    tpu.vector_store %arg8[%c0_12, %c0_13], %29 {strides = array<i32>} : memref<1x128xf32, #tpu.memory_space<vmem>>, vector<1x128xf32>,
    %c0_i32_14 = arith.constant 0 : i32
    %31 = arith.cmpi eq, %arg0, %c0_i32_14 : i32
    %32 = arith.extui %31 : i1 to i32
    %c0_i32_15 = arith.constant 0 : i32
    %33 = arith.cmpi ne, %32, %c0_i32_15 : i32
    scf.if %33 {
      %c0_16 = arith.constant 0 : index
      %c0_17 = arith.constant 0 : index
      %34 = vector.load %arg8[%c0_16, %c0_17] : memref<1x128xf32, #tpu.memory_space<vmem>>, vector<1x128xf32>
      %35 = vector.extract_strided_slice %34 {offsets = [0, 32], sizes = [1, 1], strides = [1, 1]} : vector<1x128xf32> to vector<1x1xf32>
      %c0_18 = arith.constant 0 : index
      %c0_19 = arith.constant 0 : index
      %36 = vector.load %arg4[%c0_18, %c0_19] : memref<128x128xf32, #tpu.memory_space<vmem>>, vector<128x128xf32>
      %cst_20 = arith.constant dense<0.000000e+00> : vector<1x128xf32>
      %37 = tpu.matmul %34, %36, %cst_20 {dimension_numbers = #tpu.dot_dimension_numbers<[1], [0], [0], [1], [0, 0, 1, 1], [], []>} : vector<1x128xf32>, vector<128x128xf32>, vector<1x128xf32> -> vector<1x128xf32>
      %c0_21 = arith.constant 0 : index
      %c0_22 = arith.constant 0 : index
      %38 = vector.load %arg5[%c0_21, %c0_22] : memref<1x128xf32, #tpu.memory_space<vmem>>, vector<1x128xf32>
      %39 = vector.broadcast %35 : vector<1x1xf32> to vector<1x128xf32>
      %40 = arith.mulf %39, %38 : vector<1x128xf32>
      %41 = arith.addf %37, %40 : vector<1x128xf32>
      %cst_23 = arith.constant 5.000000e-01 : f32
      %42 = vector.broadcast %cst_23 : f32 to vector<1x128xf32>
      %43 = arith.mulf %41, %42 : vector<1x128xf32>
      %cst_24 = arith.constant 5.000000e-01 : f32
      %44 = vector.broadcast %cst_24 : f32 to vector<1x1xf32>
      %45 = arith.mulf %35, %44 : vector<1x1xf32>
      %cst_25 = arith.constant 1.000000e+00 : f32
      %46 = vector.broadcast %cst_25 : f32 to vector<1x1xf32>
      %47 = arith.subf %46, %45 : vector<1x1xf32>
      %c0_26 = arith.constant 0 : index
      %c0_27 = arith.constant 0 : index
      %48 = vector.load %arg6[%c0_26, %c0_27] : memref<16x128xf32, #tpu.memory_space<vmem>>, vector<16x128xf32>
      %49 = vector.broadcast %47 : vector<1x1xf32> to vector<16x128xf32>
      %50 = arith.mulf %49, %48 : vector<16x128xf32>
      %51 = vector.broadcast %43 : vector<1x128xf32> to vector<16x128xf32>
      %52 = arith.addf %51, %50 : vector<16x128xf32>
      %c0_28 = arith.constant 0 : index
      %c0_29 = arith.constant 0 : index
      %53 = vector.load %arg7[%c0_28, %c0_29] : memref<16x128xf32, #tpu.memory_space<vmem>>, vector<16x128xf32>
      tpu.vector_store %arg7[%c0_28, %c0_29], %52 {strides = array<i32>} : memref<16x128xf32, #tpu.memory_space<vmem>>, vector<16x128xf32>,
    } else {
    }
    return
  }
  func.func @transform_0(%arg0: i32) -> (i32, i32) {
    %c0_i32 = arith.constant 0 : i32
    %c0_i32_0 = arith.constant 0 : i32
    return %arg0, %c0_i32 : i32, i32
  }
  func.func @transform_1(%arg0: i32) -> (i32, i32) {
    %c0_i32 = arith.constant 0 : i32
    %c0_i32_0 = arith.constant 0 : i32
    %c0_i32_1 = arith.constant 0 : i32
    return %c0_i32, %c0_i32_0 : i32, i32
  }
  func.func @transform_2(%arg0: i32) -> (i32, i32) {
    %c0_i32 = arith.constant 0 : i32
    %c0_i32_0 = arith.constant 0 : i32
    %c0_i32_1 = arith.constant 0 : i32
    return %c0_i32, %c0_i32_0 : i32, i32
  }
  func.func @transform_3(%arg0: i32) -> (i32, i32) {
    %c0_i32 = arith.constant 0 : i32
    %c0_i32_0 = arith.constant 0 : i32
    %c0_i32_1 = arith.constant 0 : i32
    return %c0_i32, %c0_i32_0 : i32, i32
  }
  func.func @transform_4(%arg0: i32) -> (i32, i32) {
    %c0_i32 = arith.constant 0 : i32
    %c0_i32_0 = arith.constant 0 : i32
    %c0_i32_1 = arith.constant 0 : i32
    return %c0_i32, %c0_i32_0 : i32, i32
  }
  func.func @transform_5(%arg0: i32) -> (i32, i32) {
    %c0_i32 = arith.constant 0 : i32
    %c0_i32_0 = arith.constant 0 : i32
    %c0_i32_1 = arith.constant 0 : i32
    return %c0_i32, %c0_i32_0 : i32, i32
  }
  func.func @transform_6(%arg0: i32) -> (i32, i32) {
    %c0_i32 = arith.constant 0 : i32
    %c0_i32_0 = arith.constant 0 : i32
    %c0_i32_1 = arith.constant 0 : i32
    return %c0_i32, %c0_i32_0 : i32, i32
  }
}

module attributes {stable_mosaic.version = 11 : i64} {
  func.func @gated_prompt_kernel(%arg0: i32, %arg1: memref<2x128xf32, #tpu.memory_space<vmem>>, %arg2: memref<128x128xf32, #tpu.memory_space<vmem>>, %arg3: memref<1x128xf32, #tpu.memory_space<vmem>>, %arg4: memref<128x128xf32, #tpu.memory_space<vmem>>, %arg5: memref<1x128xf32, #tpu.memory_space<vmem>>, %arg6: memref<16x128xf32, #tpu.memory_space<vmem>>, %arg7: memref<16x128xf32, #tpu.memory_space<vmem>>, %arg8: memref<1x128xf32, #tpu.memory_space<vmem>>) attributes {dimension_semantics = [#tpu.dimension_semantics<arbitrary>], iteration_bounds = array<i64: 1>, scalar_prefetch = 0 : i64, scratch_operands = 1 : i64, tpu.core_type = #tpu.core_type<tc>, window_params = [{transform_indices = @transform_0, window_bounds = array<i64: 2, 128>}, {pipeline_mode = #tpu.pipeline_mode<synchronous>, transform_indices = @transform_1, window_bounds = array<i64: 128, 128>}, {pipeline_mode = #tpu.pipeline_mode<synchronous>, transform_indices = @transform_2, window_bounds = array<i64: 1, 128>}, {pipeline_mode = #tpu.pipeline_mode<synchronous>, transform_indices = @transform_3, window_bounds = array<i64: 128, 128>}, {pipeline_mode = #tpu.pipeline_mode<synchronous>, transform_indices = @transform_4, window_bounds = array<i64: 1, 128>}, {pipeline_mode = #tpu.pipeline_mode<synchronous>, transform_indices = @transform_5, window_bounds = array<i64: 16, 128>}, {pipeline_mode = #tpu.pipeline_mode<synchronous>, transform_indices = @transform_6, window_bounds = array<i64: 16, 128>}]} {
    %c0_i32 = arith.constant 0 : i32
    %0 = arith.cmpi eq, %arg0, %c0_i32 : i32
    %1 = arith.extui %0 : i1 to i32
    %c0_i32_0 = arith.constant 0 : i32
    %2 = arith.cmpi ne, %1, %c0_i32_0 : i32
    scf.if %2 {
      %cst_16 = arith.constant 0.000000e+00 : f32
      %34 = vector.broadcast %cst_16 : f32 to vector<1x128xf32>
      %c0_17 = arith.constant 0 : index
      %c0_18 = arith.constant 0 : index
      %35 = vector.load %arg8[%c0_17, %c0_18] : memref<1x128xf32, #tpu.memory_space<vmem>>, vector<1x128xf32>
      tpu.vector_store %arg8[%c0_17, %c0_18], %34 {strides = array<i32>} : memref<1x128xf32, #tpu.memory_space<vmem>>, vector<1x128xf32>,
    } else {
    }
    %c0 = arith.constant 0 : index
    %c0_1 = arith.constant 0 : index
    %3 = vector.load %arg1[%c0, %c0_1] : memref<2x128xf32, #tpu.memory_space<vmem>>, vector<2x128xf32>
    %c0_2 = arith.constant 0 : index
    %c0_3 = arith.constant 0 : index
    %4 = vector.load %arg2[%c0_2, %c0_3] : memref<128x128xf32, #tpu.memory_space<vmem>>, vector<128x128xf32>
    %cst = arith.constant dense<0.000000e+00> : vector<2x128xf32>
    %5 = tpu.matmul %3, %4, %cst {dimension_numbers = #tpu.dot_dimension_numbers<[1], [0], [0], [1], [0, 0, 1, 1], [], []>} : vector<2x128xf32>, vector<128x128xf32>, vector<2x128xf32> -> vector<2x128xf32>
    %c0_4 = arith.constant 0 : index
    %c0_5 = arith.constant 0 : index
    %6 = vector.load %arg3[%c0_4, %c0_5] : memref<1x128xf32, #tpu.memory_space<vmem>>, vector<1x128xf32>
    %7 = vector.broadcast %6 : vector<1x128xf32> to vector<2x128xf32>
    %8 = arith.addf %5, %7 : vector<2x128xf32>
    %9 = vector.extract_strided_slice %8 {offsets = [0, 32], sizes = [2, 1], strides = [1, 1]} : vector<2x128xf32> to vector<2x1xf32>
    %10 = arith.negf %9 : vector<2x1xf32>
    %11 = math.exp %10 : vector<2x1xf32>
    %cst_6 = arith.constant 1.000000e+00 : f32
    %12 = vector.broadcast %cst_6 : f32 to vector<2x1xf32>
    %13 = arith.addf %12, %11 : vector<2x1xf32>
    %14 = arith.divf %12, %13 : vector<2x1xf32>
    %cst_7 = arith.constant 0.000000e+00 : f32
    %15 = vector.broadcast %cst_7 : f32 to vector<2x128xf32>
    %16 = arith.maximumf %8, %15 : vector<2x128xf32>
    %17 = tpu.iota {dimensions = array<i32: 1>} : vector<1x128xi32>
    %c32_i32 = arith.constant 32 : i32
    %18 = vector.broadcast %c32_i32 : i32 to vector<1x128xi32>
    %19 = arith.cmpi eq, %17, %18 : vector<1x128xi32>
    %cst_8 = arith.constant 1.000000e+00 : f32
    %20 = vector.shape_cast %19 : vector<1x128xi1> to vector<1x128xi1>
    %21 = vector.broadcast %20 : vector<1x128xi1> to vector<2x128xi1>
    %22 = vector.broadcast %cst_8 : f32 to vector<2x128xf32>
    %23 = arith.select %21, %22, %16 : vector<2x128xi1>, vector<2x128xf32>
    %c0_9 = arith.constant 0 : index
    %c0_10 = arith.constant 0 : index
    %24 = vector.load %arg8[%c0_9, %c0_10] : memref<1x128xf32, #tpu.memory_space<vmem>>, vector<1x128xf32>
    %25 = vector.broadcast %14 : vector<2x1xf32> to vector<2x128xf32>
    %26 = arith.mulf %25, %23 : vector<2x128xf32>
    %cst_11 = arith.constant dense<0.000000e+00> : vector<128xf32>
    %27 = vector.multi_reduction <add>, %26, %cst_11 [0] : vector<2x128xf32> to vector<128xf32>
    %28 = vector.shape_cast %27 : vector<128xf32> to vector<1x128xf32>
    %29 = arith.addf %24, %28 : vector<1x128xf32>
    %c0_12 = arith.constant 0 : index
    %c0_13 = arith.constant 0 : index
    %30 = vector.load %arg8[%c0_12, %c0_13] : memref<1x128xf32, #tpu.memory_space<vmem>>, vector<1x128xf32>
    tpu.vector_store %arg8[%c0_12, %c0_13], %29 {strides = array<i32>} : memref<1x128xf32, #tpu.memory_space<vmem>>, vector<1x128xf32>,
    %c0_i32_14 = arith.constant 0 : i32
    %31 = arith.cmpi eq, %arg0, %c0_i32_14 : i32
    %32 = arith.extui %31 : i1 to i32
    %c0_i32_15 = arith.constant 0 : i32
    %33 = arith.cmpi ne, %32, %c0_i32_15 : i32
    scf.if %33 {
      %c0_16 = arith.constant 0 : index
      %c0_17 = arith.constant 0 : index
      %34 = vector.load %arg8[%c0_16, %c0_17] : memref<1x128xf32, #tpu.memory_space<vmem>>, vector<1x128xf32>
      %35 = vector.extract_strided_slice %34 {offsets = [0, 32], sizes = [1, 1], strides = [1, 1]} : vector<1x128xf32> to vector<1x1xf32>
      %c0_18 = arith.constant 0 : index
      %c0_19 = arith.constant 0 : index
      %36 = vector.load %arg4[%c0_18, %c0_19] : memref<128x128xf32, #tpu.memory_space<vmem>>, vector<128x128xf32>
      %cst_20 = arith.constant dense<0.000000e+00> : vector<1x128xf32>
      %37 = tpu.matmul %34, %36, %cst_20 {dimension_numbers = #tpu.dot_dimension_numbers<[1], [0], [0], [1], [0, 0, 1, 1], [], []>} : vector<1x128xf32>, vector<128x128xf32>, vector<1x128xf32> -> vector<1x128xf32>
      %c0_21 = arith.constant 0 : index
      %c0_22 = arith.constant 0 : index
      %38 = vector.load %arg5[%c0_21, %c0_22] : memref<1x128xf32, #tpu.memory_space<vmem>>, vector<1x128xf32>
      %39 = vector.broadcast %35 : vector<1x1xf32> to vector<1x128xf32>
      %40 = arith.mulf %39, %38 : vector<1x128xf32>
      %41 = arith.addf %37, %40 : vector<1x128xf32>
      %cst_23 = arith.constant 5.000000e-01 : f32
      %42 = vector.broadcast %cst_23 : f32 to vector<1x128xf32>
      %43 = arith.mulf %41, %42 : vector<1x128xf32>
      %cst_24 = arith.constant 5.000000e-01 : f32
      %44 = vector.broadcast %cst_24 : f32 to vector<1x1xf32>
      %45 = arith.mulf %35, %44 : vector<1x1xf32>
      %cst_25 = arith.constant 1.000000e+00 : f32
      %46 = vector.broadcast %cst_25 : f32 to vector<1x1xf32>
      %47 = arith.subf %46, %45 : vector<1x1xf32>
      %c0_26 = arith.constant 0 : index
      %c0_27 = arith.constant 0 : index
      %48 = vector.load %arg6[%c0_26, %c0_27] : memref<16x128xf32, #tpu.memory_space<vmem>>, vector<16x128xf32>
      %49 = vector.broadcast %47 : vector<1x1xf32> to vector<16x128xf32>
      %50 = arith.mulf %49, %48 : vector<16x128xf32>
      %51 = vector.broadcast %43 : vector<1x128xf32> to vector<16x128xf32>
      %52 = arith.addf %51, %50 : vector<16x128xf32>
      %c0_28 = arith.constant 0 : index
      %c0_29 = arith.constant 0 : index
      %53 = vector.load %arg7[%c0_28, %c0_29] : memref<16x128xf32, #tpu.memory_space<vmem>>, vector<16x128xf32>
      tpu.vector_store %arg7[%c0_28, %c0_29], %52 {strides = array<i32>} : memref<16x128xf32, #tpu.memory_space<vmem>>, vector<16x128xf32>,
    } else {
    }
    return
  }
  func.func @transform_0(%arg0: i32) -> (i32, i32) {
    %c0_i32 = arith.constant 0 : i32
    %c0_i32_0 = arith.constant 0 : i32
    return %arg0, %c0_i32 : i32, i32
  }
  func.func @transform_1(%arg0: i32) -> (i32, i32) {
    %c0_i32 = arith.constant 0 : i32
    %c0_i32_0 = arith.constant 0 : i32
    %c0_i32_1 = arith.constant 0 : i32
    return %c0_i32, %c0_i32_0 : i32, i32
  }
  func.func @transform_2(%arg0: i32) -> (i32, i32) {
    %c0_i32 = arith.constant 0 : i32
    %c0_i32_0 = arith.constant 0 : i32
    %c0_i32_1 = arith.constant 0 : i32
    return %c0_i32, %c0_i32_0 : i32, i32
  }
  func.func @transform_3(%arg0: i32) -> (i32, i32) {
    %c0_i32 = arith.constant 0 : i32
    %c0_i32_0 = arith.constant 0 : i32
    %c0_i32_1 = arith.constant 0 : i32
    return %c0_i32, %c0_i32_0 : i32, i32
  }
  func.func @transform_4(%arg0: i32) -> (i32, i32) {
    %c0_i32 = arith.constant 0 : i32
    %c0_i32_0 = arith.constant 0 : i32
    %c0_i32_1 = arith.constant 0 : i32
    return %c0_i32, %c0_i32_0 : i32, i32
  }
  func.func @transform_5(%arg0: i32) -> (i32, i32) {
    %c0_i32 = arith.constant 0 : i32
    %c0_i32_0 = arith.constant 0 : i32
    %c0_i32_1 = arith.constant 0 : i32
    return %c0_i32, %c0_i32_0 : i32, i32
  }
  func.func @transform_6(%arg0: i32) -> (i32, i32) {
    %c0_i32 = arith.constant 0 : i32
    %c0_i32_0 = arith.constant 0 : i32
    %c0_i32_1 = arith.constant 0 : i32
    return %c0_i32, %c0_i32_0 : i32, i32
  }
}

</mosaic_0001>

<llo_original>
// kernel: tpu_custom_call.1
$region0: #{tpu_custom_call.1}
  #allocation0 [shape = 'u32[]', space=smem, size = 0x4, offset = 0x4, fixed_abs, tag = 'smem constant byte address 0x4 - core index']
  #allocation1 [shape = 'u32[144,128]{1,0:T(1,128)}', space=vmem, size = 0x12000, scoped, tag = 'internal scratch']
  #allocation2 [shape = 'f32[1,128]{1,0:T(1,128)}', space=vmem, size = 0x200, scoped, tag = 'scratch operand']
  %s0 = inlined_call_operand.hbm [shape: f32[2,128], index: 0, kind: input, shape index: {}]
  %s1 = inlined_call_operand.hbm [shape: f32[128,128], index: 1, kind: input, shape index: {}]
  %s2 = inlined_call_operand.vmem [shape: f32[1,128], index: 2, kind: input, shape index: {}]
  %s3 = inlined_call_operand.hbm [shape: f32[128,128], index: 3, kind: input, shape index: {}]
  %s4 = inlined_call_operand.vmem [shape: f32[1,128], index: 4, kind: input, shape index: {}]
  %s5 = inlined_call_operand.hbm [shape: f32[16,128], index: 5, kind: input, shape index: {}]
  %s6 = inlined_call_operand.hbm [shape: f32[16,128], index: 6, kind: output, shape index: {}]
  %s7 = sld [smem:[#allocation0]]
  $region58: #{tpu_custom_call.1} parent=0
    _
  %s9 = ssub.s32 1, %s7
  %s10 = scalar_select 0, %s9, %s7
  $region1: #{tpu_custom_call.1} parent=0
    #allocation3 [shape = 'u8[1024]{0}', space=vmem, size = 0x400, scoped, tag = 'input window, operand 0, single buffered']
    #allocation4 [shape = 's32[1]{0}', space=sflag, size = 0x4, scoped, tag = 'scoped memory for tpu_custom_call.1']
    #allocation5 [shape = 's32[1]{0}', space=sflag, size = 0x4, scoped, tag = 'scoped memory for tpu_custom_call.1']
    #allocation6 [shape = 'u8[65536]{0}', space=vmem, size = 0x10000, scoped, tag = 'input window, operand 1, single buffered']
    #allocation7 [shape = 's32[1]{0}', space=sflag, size = 0x4, scoped, tag = 'scoped memory for tpu_custom_call.1']
    #allocation8 [shape = 'u8[65536]{0}', space=vmem, size = 0x10000, scoped, tag = 'input window, operand 3, single buffered']
    #allocation9 [shape = 'u8[8192]{0}', space=vmem, size = 0x2000, scoped, tag = 'input window, operand 5, single buffered']
    #allocation10 [shape = 's32[1]{0}', space=sflag, size = 0x4, scoped, tag = 'scoped memory for tpu_custom_call.1']
    #allocation11 [shape = 'u8[8192]{0}', space=vmem, size = 0x2000, scoped, tag = 'output window, operand 0, single buffered']
    %11 = vsyncpa [#allocation4], 0
    %12 = vsyncpa [#allocation7], 0
    %13 = vsyncpa [#allocation10], 0
    %14 = vsyncpa [#allocation5], 0
    // Predicated region
    $region2: #{tpu_custom_call.1} parent=1 // pred_check
      _
    $region3: #{tpu_custom_call.1} parent=1 // pred_check_branch
      %16 = sbr.rel (0) target = $region5
    $region4: #{tpu_custom_call.1} parent=1 // pred_region
      %s18 = ssub.s32 32, 32
      %19 = vsyncadd [#allocation4], %s18
      %s21 = sshll.u32 [#allocation3], 4
      %s22 = int_to_ptr.vmem [resolvable:$true] %s21
      %24 = dma.hbm_to_vmem [thread:$0]  %s0, 32, %s22, [#allocation4]
    $region5: #{tpu_custom_call.1} parent=1 // pred_fallthru
      _
    // Predicated region
    $region6: #{tpu_custom_call.1} parent=1 // pred_check
      _
    $region7: #{tpu_custom_call.1} parent=1 // pred_check_branch
      %26 = sbr.rel (0) target = $region9
    $region8: #{tpu_custom_call.1} parent=1 // pred_region
      %s28 = ssub.s32 2048, 2048
      %29 = vsyncadd [#allocation7], %s28
      %s30 = sshll.u32 [#allocation6], 4
      %s31 = int_to_ptr.vmem [resolvable:$true] %s30
      %36 = dma.hbm_to_vmem [thread:$0]  %s1, 2048, %s31, [#allocation7], 128, 128, 8
    $region9: #{tpu_custom_call.1} parent=1 // pred_fallthru
      _
    // Predicated region
    $region10: #{tpu_custom_call.1} parent=1 // pred_check
      _
    $region11: #{tpu_custom_call.1} parent=1 // pred_check_branch
      %38 = sbr.rel (0) target = $region13
    $region12: #{tpu_custom_call.1} parent=1 // pred_region
      _
    $region13: #{tpu_custom_call.1} parent=1 // pred_fallthru
      _
    // Predicated region
    $region14: #{tpu_custom_call.1} parent=1 // pred_check
      _
    $region15: #{tpu_custom_call.1} parent=1 // pred_check_branch
      %40 = sbr.rel (0) target = $region17
    $region16: #{tpu_custom_call.1} parent=1 // pred_region
      %s42 = ssub.s32 2048, 2048
      %43 = vsyncadd [#allocation7], %s42
      %s44 = sshll.u32 [#allocation8], 4
      %s45 = int_to_ptr.vmem [resolvable:$true] %s44
      %50 = dma.hbm_to_vmem [thread:$0]  %s3, 2048, %s45, [#allocation7], 128, 128, 8
    $region17: #{tpu_custom_call.1} parent=1 // pred_fallthru
      _
    // Predicated region
    $region18: #{tpu_custom_call.1} parent=1 // pred_check
      _
    $region19: #{tpu_custom_call.1} parent=1 // pred_check_branch
      %52 = sbr.rel (0) target = $region21
    $region20: #{tpu_custom_call.1} parent=1 // pred_region
      _
    $region21: #{tpu_custom_call.1} parent=1 // pred_fallthru
      _
    // Predicated region
    $region22: #{tpu_custom_call.1} parent=1 // pred_check
      _
    $region23: #{tpu_custom_call.1} parent=1 // pred_check_branch
      %54 = sbr.rel (0) target = $region25
    $region24: #{tpu_custom_call.1} parent=1 // pred_region
      %s56 = ssub.s32 256, 256
      %57 = vsyncadd [#allocation10], %s56
      %s58 = sshll.u32 [#allocation9], 4
      %s59 = int_to_ptr.vmem [resolvable:$true] %s58
      %64 = dma.hbm_to_vmem [thread:$0]  %s5, 256, %s59, [#allocation10], 128, 128, 8
    $region25: #{tpu_custom_call.1} parent=1 // pred_fallthru
      _
    // Predicated region
    $region26: #{tpu_custom_call.1} parent=1 // pred_check
      _
    $region27: #{tpu_custom_call.1} parent=1 // pred_check_branch
      %66 = sbr.rel (0) target = $region29
    $region28: #{tpu_custom_call.1} parent=1 // pred_region
      %67 = dma.done [#allocation4], 32
    $region29: #{tpu_custom_call.1} parent=1 // pred_fallthru
      _
    // Predicated region
    $region30: #{tpu_custom_call.1} parent=1 // pred_check
      _
    $region31: #{tpu_custom_call.1} parent=1 // pred_check_branch
      %69 = sbr.rel (0) target = $region33
    $region32: #{tpu_custom_call.1} parent=1 // pred_region
      %70 = dma.done [#allocation7], 2048
    $region33: #{tpu_custom_call.1} parent=1 // pred_fallthru
      _
    // Predicated region
    $region34: #{tpu_custom_call.1} parent=1 // pred_check
      _
    $region35: #{tpu_custom_call.1} parent=1 // pred_check_branch
      %72 = sbr.rel (0) target = $region37
    $region36: #{tpu_custom_call.1} parent=1 // pred_region
      %73 = dma.done [#allocation7], 2048
    $region37: #{tpu_custom_call.1} parent=1 // pred_fallthru
      _
    // Predicated region
    $region38: #{tpu_custom_call.1} parent=1 // pred_check
      _
    $region39: #{tpu_custom_call.1} parent=1 // pred_check_branch
      %75 = sbr.rel (0) target = $region41
    $region40: #{tpu_custom_call.1} parent=1 // pred_region
      %76 = dma.done [#allocation10], 256
    $region41: #{tpu_custom_call.1} parent=1 // pred_fallthru
      _
    %p77 = scmp.eq.s32.totalorder 0, 0
    // Predicated region
    $region42: #{tpu_custom_call.1} parent=1 // pred_check
      %p78 = pneg %p77
    $region43: #{tpu_custom_call.1} parent=1 // pred_check_branch
      %80 = sbr.rel (%p78) target = $region45
    $region44: #{tpu_custom_call.1} parent=1 // pred_region
      %81 = vst [vmem:[#allocation2] sm:$0x1] 0.0
    $region45: #{tpu_custom_call.1} parent=1 // pred_fallthru
      _
    %v82 = vld [vmem:[#allocation3] sm:$0x3]
    %v83 = vld [vmem:[#allocation6] sm:$0xff]
    %v84 = vld [vmem:[#allocation6 + $0x8] sm:$0xff]
    %v85 = vld [vmem:[#allocation6 + $0x10] sm:$0xff]
    %v86 = vld [vmem:[#allocation6 + $0x18] sm:$0xff]
    %v87 = vld [vmem:[#allocation6 + $0x20] sm:$0xff]
    %v88 = vld [vmem:[#allocation6 + $0x28] sm:$0xff]
    %v89 = vld [vmem:[#allocation6 + $0x30] sm:$0xff]
    %v90 = vld [vmem:[#allocation6 + $0x38] sm:$0xff]
    %v91 = vld [vmem:[#allocation6 + $0x40] sm:$0xff]
    %v92 = vld [vmem:[#allocation6 + $0x48] sm:$0xff]
    %v93 = vld [vmem:[#allocation6 + $0x50] sm:$0xff]
    %v94 = vld [vmem:[#allocation6 + $0x58] sm:$0xff]
    %v95 = vld [vmem:[#allocation6 + $0x60] sm:$0xff]
    %v96 = vld [vmem:[#allocation6 + $0x68] sm:$0xff]
    %v97 = vld [vmem:[#allocation6 + $0x70] sm:$0xff]
    %v98 = vld [vmem:[#allocation6 + $0x78] sm:$0xff]
    %v99 = vld [vmem:[%s2] sm:$0x1]
    %v101 = vlaneseq
    %v102 = vshrl.u32 %v101, 7
    %v103 = vsub.s32 0, %v102
    %v104 = vrot.slane %v99, %v103
    %106 = vmatprep.subr.mxu0 0.0
    %107 = vmatpush1.msra.mxu0 %v98
    %108 = vmatprep.subr.mxu0 0.0
    %109 = vmatpush1.msra.mxu0 %v97
    %110 = vmatprep.subr.mxu0 0.0
    %111 = vmatpush1.msra.mxu0 %v96
    %112 = vmatprep.subr.mxu0 0.0
    %113 = vmatpush1.msra.mxu0 %v95
    %114 = vmatprep.subr.mxu0 0.0
    %115 = vmatpush1.msra.mxu0 %v94
    %116 = vmatprep.subr.mxu0 0.0
    %117 = vmatpush1.msra.mxu0 %v93
    %118 = vmatprep.subr.mxu0 0.0
    %119 = vmatpush1.msra.mxu0 %v92
    %120 = vmatprep.subr.mxu0 0.0
    %121 = vmatpush1.msra.mxu0 %v91
    %122 = vmatprep.subr.mxu0 0.0
    %123 = vmatpush1.msra.mxu0 %v90
    %124 = vmatprep.subr.mxu0 0.0
    %125 = vmatpush1.msra.mxu0 %v89
    %126 = vmatprep.subr.mxu0 0.0
    %127 = vmatpush1.msra.mxu0 %v88
    %128 = vmatprep.subr.mxu0 0.0
    %129 = vmatpush1.msra.mxu0 %v87
    %130 = vmatprep.subr.mxu0 0.0
    %131 = vmatpush1.msra.mxu0 %v86
    %132 = vmatprep.subr.mxu0 0.0
    %133 = vmatpush1.msra.mxu0 %v85
    %134 = vmatprep.subr.mxu0 0.0
    %135 = vmatpush1.msra.mxu0 %v84
    %136 = vmatprep.subr.mxu0 0.0
    %137 = vmatpush1.msra.mxu0 %v83
    %138 = vmatprep.subr.mxu0 0.0
    %139 = vmatpush2.msra.mxu0 0.0
    %140 = vmatprep.subr.mxu0 0.0
    %141 = vmatpush2.msra.mxu0 0.0
    %142 = vmatprep.subr.mxu0 0.0
    %143 = vmatpush2.msra.mxu0 0.0
    %144 = vmatprep.subr.mxu0 0.0
    %145 = vmatpush2.msra.mxu0 0.0
    %146 = vmatprep.subr.mxu0 0.0
    %147 = vmatpush2.msra.mxu0 0.0
    %148 = vmatprep.subr.mxu0 0.0
    %149 = vmatpush2.msra.mxu0 0.0
    %150 = vmatprep.subr.mxu0 0.0
    %151 = vmatpush2.msra.mxu0 0.0
    %152 = vmatprep.subr.mxu0 0.0
    %153 = vmatpush2.msra.mxu0 0.0
    %154 = vmatprep.subr.mxu0 0.0
    %155 = vmatpush2.msra.mxu0 0.0
    %156 = vmatprep.subr.mxu0 0.0
    %157 = vmatpush2.msra.mxu0 0.0
    %158 = vmatprep.subr.mxu0 0.0
    %159 = vmatpush2.msra.mxu0 0.0
    %160 = vmatprep.subr.mxu0 0.0
    %161 = vmatpush2.msra.mxu0 0.0
    %162 = vmatprep.subr.mxu0 0.0
    %163 = vmatpush2.msra.mxu0 0.0
    %164 = vmatprep.subr.mxu0 0.0
    %165 = vmatpush2.msra.mxu0 0.0
    %166 = vmatprep.subr.mxu0 0.0
    %167 = vmatpush2.msra.mxu0 0.0
    %168 = vmatprep.subr.mxu0 0.0
    %169 = vmatpush2.msra.mxu0 0.0
    %170 = vmatprep.mubr.f32.mxu0 0.0
    %171 = vmatmul.mubr.f32.gmra.mxu0 %v82
    %v172 = vpop.f32.mrf.mxu0
    %v173 = vadd.f32 %v104, %v172
    %v174 = vpop.f32.mrf.mxu0
    %175 = vdwg.mxu0
    %v176 = vxor.u32 %v173, 2147483648
    %v177 = vmul.f32 %v176, 1.442695
    %v178 = vpow.pop %v177
    %v179 = vadd.f32 %v178, 1.0
    %v180 = vrcp.pop %v179
    %v181 = vmul.f32 1.0, %v180
    %v182 = vmax.f32 %v173, 0.0
    %v183 = vlaneseq
    %v184 = vand.u32 %v183, 127
    %vm185 = vcmp.eq.s32.totalorder %v184, 32
    %v186 = vsel %vm185, 1, 0
    %vm187 = vcmp.eq.s32.totalorder %v186, 1
    %v188 = vsel %vm187, 1.0, %v182
    %v189 = vld [vmem:[#allocation2] sm:$0x1]
    %191 = vset.pattern.permute.xlu0 32
    %192 = vperm.xlu0 %191, %v181
    %v193 = vpop.permute.xlu0 %192
    %v195 = vmul.f32 %v193, %v188
    %vm196 = vcmask 1041408
    %v197 = vsel %vm196, %v195, 0.0
    %v198 = vrot.slane %v197, 4
    %v199 = vadd.f32 %v197, %v198
    %v200 = vrot.slane %v199, 2
    %v201 = vadd.f32 %v199, %v200
    %v202 = vrot.slane %v201, 1
    %v203 = vadd.f32 %v201, %v202
    %v204 = vadd.f32 %v189, %v203
    %205 = vst [vmem:[#allocation2] sm:$0x1] %v204
    // Predicated region
    $region46: #{tpu_custom_call.1} parent=1 // pred_check
      %p206 = pneg %p77
    $region47: #{tpu_custom_call.1} parent=1 // pred_check_branch
      %208 = sbr.rel (%p206) target = $region49
    $region48: #{tpu_custom_call.1} parent=1 // pred_region
      %v209 = vld [vmem:[#allocation2] sm:$0x1]
      %v210 = vld [vmem:[#allocation8] sm:$0xff]
      %v211 = vld [vmem:[#allocation8 + $0x8] sm:$0xff]
      %v212 = vld [vmem:[#allocation8 + $0x10] sm:$0xff]
      %v213 = vld [vmem:[#allocation8 + $0x18] sm:$0xff]
      %v214 = vld [vmem:[#allocation8 + $0x20] sm:$0xff]
      %v215 = vld [vmem:[#allocation8 + $0x28] sm:$0xff]
      %v216 = vld [vmem:[#allocation8 + $0x30] sm:$0xff]
      %v217 = vld [vmem:[#allocation8 + $0x38] sm:$0xff]
      %v218 = vld [vmem:[#allocation8 + $0x40] sm:$0xff]
      %v219 = vld [vmem:[#allocation8 + $0x48] sm:$0xff]
      %v220 = vld [vmem:[#allocation8 + $0x50] sm:$0xff]
      %v221 = vld [vmem:[#allocation8 + $0x58] sm:$0xff]
      %v222 = vld [vmem:[#allocation8 + $0x60] sm:$0xff]
      %v223 = vld [vmem:[#allocation8 + $0x68] sm:$0xff]
      %v224 = vld [vmem:[#allocation8 + $0x70] sm:$0xff]
      %v225 = vld [vmem:[#allocation8 + $0x78] sm:$0xff]
      %v226 = vld [vmem:[%s4] sm:$0x1]
      %228 = vset.pattern.permute.xlu0 32
      %229 = vperm.xlu0 %228, %v209
      %v230 = vpop.permute.xlu0 %229
      %v232 = vlaneseq
      %v233 = vshrl.u32 %v232, 7
      %v234 = vsub.s32 0, %v233
      %v235 = vrot.slane %v230, %v234
      %v236 = vmul.f32 %v235, %v226
      %237 = vmatprep.subr.mxu0 0.0
      %238 = vmatpush1.msra.mxu0 %v225
      %239 = vmatprep.subr.mxu0 0.0
      %240 = vmatpush1.msra.mxu0 %v224
      %241 = vmatprep.subr.mxu0 0.0
      %242 = vmatpush1.msra.mxu0 %v223
      %243 = vmatprep.subr.mxu0 0.0
      %244 = vmatpush1.msra.mxu0 %v222
      %245 = vmatprep.subr.mxu0 0.0
      %246 = vmatpush1.msra.mxu0 %v221
      %247 = vmatprep.subr.mxu0 0.0
      %248 = vmatpush1.msra.mxu0 %v220
      %249 = vmatprep.subr.mxu0 0.0
      %250 = vmatpush1.msra.mxu0 %v219
      %251 = vmatprep.subr.mxu0 0.0
      %252 = vmatpush1.msra.mxu0 %v218
      %253 = vmatprep.subr.mxu0 0.0
      %254 = vmatpush1.msra.mxu0 %v217
      %255 = vmatprep.subr.mxu0 0.0
      %256 = vmatpush1.msra.mxu0 %v216
      %257 = vmatprep.subr.mxu0 0.0
      %258 = vmatpush1.msra.mxu0 %v215
      %259 = vmatprep.subr.mxu0 0.0
      %260 = vmatpush1.msra.mxu0 %v214
      %261 = vmatprep.subr.mxu0 0.0
      %262 = vmatpush1.msra.mxu0 %v213
      %263 = vmatprep.subr.mxu0 0.0
      %264 = vmatpush1.msra.mxu0 %v212
      %265 = vmatprep.subr.mxu0 0.0
      %266 = vmatpush1.msra.mxu0 %v211
      %267 = vmatprep.subr.mxu0 0.0
      %268 = vmatpush1.msra.mxu0 %v210
      %269 = vmatprep.subr.mxu0 0.0
      %270 = vmatpush2.msra.mxu0 0.0
      %271 = vmatprep.subr.mxu0 0.0
      %272 = vmatpush2.msra.mxu0 0.0
      %273 = vmatprep.subr.mxu0 0.0
      %274 = vmatpush2.msra.mxu0 0.0
      %275 = vmatprep.subr.mxu0 0.0
      %276 = vmatpush2.msra.mxu0 0.0
      %277 = vmatprep.subr.mxu0 0.0
      %278 = vmatpush2.msra.mxu0 0.0
      %279 = vmatprep.subr.mxu0 0.0
      %280 = vmatpush2.msra.mxu0 0.0
      %281 = vmatprep.subr.mxu0 0.0
      %282 = vmatpush2.msra.mxu0 0.0
      %283 = vmatprep.subr.mxu0 0.0
      %284 = vmatpush2.msra.mxu0 0.0
      %285 = vmatprep.subr.mxu0 0.0
      %286 = vmatpush2.msra.mxu0 0.0
      %287 = vmatprep.subr.mxu0 0.0
      %288 = vmatpush2.msra.mxu0 0.0
      %289 = vmatprep.subr.mxu0 0.0
      %290 = vmatpush2.msra.mxu0 0.0
      %291 = vmatprep.subr.mxu0 0.0
      %292 = vmatpush2.msra.mxu0 0.0
      %293 = vmatprep.subr.mxu0 0.0
      %294 = vmatpush2.msra.mxu0 0.0
      %295 = vmatprep.subr.mxu0 0.0
      %296 = vmatpush2.msra.mxu0 0.0
      %297 = vmatprep.subr.mxu0 0.0
      %298 = vmatpush2.msra.mxu0 0.0
      %299 = vmatprep.subr.mxu0 0.0
      %300 = vmatpush2.msra.mxu0 0.0
      %301 = vmatprep.mubr.f32.mxu0 0.0
      %302 = vmatmul.mubr.f32.gmra.mxu0 %v209
      %v303 = vpop.f32.mrf.mxu0
      %v304 = vadd.f32 %v236, %v303
      %v305 = vpop.f32.mrf.mxu0
      %306 = vdwg.mxu0
      %v307 = vmul.f32 %v304, 0.5
      %v308 = vmul.f32 %v209, 0.5
      %v309 = vsub.f32 1.0, %v308
      %v310 = vld [vmem:[#allocation9] sm:$0xff]
      %v311 = vld [vmem:[#allocation9 + $0x8] sm:$0xff]
      %v313 = vlaneseq
      %v314 = vshrl.u32 %v313, 7
      %v315 = vsub.s32 0, %v314
      %v316 = vrot.slane %v309, %v315
      %317 = vset.pattern.permute.xlu0 32
      %318 = vperm.xlu0 %317, %v316
      %v319 = vpop.permute.xlu0 %318
      %v321 = vmul.f32 %v319, %v310
      %v322 = vmul.f32 %v319, %v311
      %v323 = vlaneseq
      %v324 = vshrl.u32 %v323, 7
      %v325 = vsub.s32 0, %v324
      %v326 = vrot.slane %v307, %v325
      %v327 = vadd.f32 %v326, %v321
      %v328 = vadd.f32 %v326, %v322
      %329 = vst [vmem:[#allocation11] sm:$0xff] %v327
      %330 = vst [vmem:[#allocation11 + $0x8] sm:$0xff] %v328
    $region49: #{tpu_custom_call.1} parent=1 // pred_fallthru
      _
    // Predicated region
    $region50: #{tpu_custom_call.1} parent=1 // pred_check
      _
    $region51: #{tpu_custom_call.1} parent=1 // pred_check_branch
      %332 = sbr.rel (0) target = $region53
    $region52: #{tpu_custom_call.1} parent=1 // pred_region
      %s334 = ssub.s32 256, 256
      %335 = vsyncadd [#allocation5], %s334
      %s336 = sshll.u32 [#allocation11], 4
      %s337 = int_to_ptr.vmem [resolvable:$true] %s336
      %342 = dma.vmem_to_hbm [thread:$0]  %s337, 256, %s6, [#allocation5], 128, 128, 8
    $region53: #{tpu_custom_call.1} parent=1 // pred_fallthru
      _
    // Predicated region
    $region54: #{tpu_custom_call.1} parent=1 // pred_check
      _
    $region55: #{tpu_custom_call.1} parent=1 // pred_check_branch
      %344 = sbr.rel (0) target = $region57
    $region56: #{tpu_custom_call.1} parent=1 // pred_region
      %345 = dma.done [#allocation5], 256
    $region57: #{tpu_custom_call.1} parent=1 // pred_fallthru
      _
    %346 = vsyncpa [#allocation4], 1
    %347 = vsyncpa [#allocation7], 1
    %348 = vsyncpa [#allocation10], 1
    %349 = vsyncpa [#allocation5], 1

// kernel: tpu_custom_call.1
$region0: #{tpu_custom_call.1}
  #allocation0 [shape = 'u32[]', space=smem, size = 0x4, offset = 0x4, fixed_abs, tag = 'smem constant byte address 0x4 - core index']
  #allocation1 [shape = 'u32[144,128]{1,0:T(1,128)}', space=vmem, size = 0x12000, scoped, tag = 'internal scratch']
  #allocation2 [shape = 'f32[1,128]{1,0:T(1,128)}', space=vmem, size = 0x200, scoped, tag = 'scratch operand']
  %s0 = inlined_call_operand.hbm [shape: f32[2,128], index: 0, kind: input, shape index: {}]
  %s1 = inlined_call_operand.hbm [shape: f32[128,128], index: 1, kind: input, shape index: {}]
  %s2 = inlined_call_operand.vmem [shape: f32[1,128], index: 2, kind: input, shape index: {}]
  %s3 = inlined_call_operand.hbm [shape: f32[128,128], index: 3, kind: input, shape index: {}]
  %s4 = inlined_call_operand.vmem [shape: f32[1,128], index: 4, kind: input, shape index: {}]
  %s5 = inlined_call_operand.hbm [shape: f32[16,128], index: 5, kind: input, shape index: {}]
  %s6 = inlined_call_operand.hbm [shape: f32[16,128], index: 6, kind: output, shape index: {}]
  %s7 = sld [smem:[#allocation0]]
  $region58: #{tpu_custom_call.1} parent=0
    _
  %s9 = ssub.s32 1, %s7
  %s10 = scalar_select 0, %s9, %s7
  $region1: #{tpu_custom_call.1} parent=0
    #allocation3 [shape = 'u8[1024]{0}', space=vmem, size = 0x400, scoped, tag = 'input window, operand 0, single buffered']
    #allocation4 [shape = 's32[1]{0}', space=sflag, size = 0x4, scoped, tag = 'scoped memory for tpu_custom_call.1']
    #allocation5 [shape = 's32[1]{0}', space=sflag, size = 0x4, scoped, tag = 'scoped memory for tpu_custom_call.1']
    #allocation6 [shape = 'u8[65536]{0}', space=vmem, size = 0x10000, scoped, tag = 'input window, operand 1, single buffered']
    #allocation7 [shape = 's32[1]{0}', space=sflag, size = 0x4, scoped, tag = 'scoped memory for tpu_custom_call.1']
    #allocation8 [shape = 'u8[65536]{0}', space=vmem, size = 0x10000, scoped, tag = 'input window, operand 3, single buffered']
    #allocation9 [shape = 'u8[8192]{0}', space=vmem, size = 0x2000, scoped, tag = 'input window, operand 5, single buffered']
    #allocation10 [shape = 's32[1]{0}', space=sflag, size = 0x4, scoped, tag = 'scoped memory for tpu_custom_call.1']
    #allocation11 [shape = 'u8[8192]{0}', space=vmem, size = 0x2000, scoped, tag = 'output window, operand 0, single buffered']
    %11 = vsyncpa [#allocation4], 0
    %12 = vsyncpa [#allocation7], 0
    %13 = vsyncpa [#allocation10], 0
    %14 = vsyncpa [#allocation5], 0
    // Predicated region
    $region2: #{tpu_custom_call.1} parent=1 // pred_check
      _
    $region3: #{tpu_custom_call.1} parent=1 // pred_check_branch
      %16 = sbr.rel (0) target = $region5
    $region4: #{tpu_custom_call.1} parent=1 // pred_region
      %s18 = ssub.s32 32, 32
      %19 = vsyncadd [#allocation4], %s18
      %s21 = sshll.u32 [#allocation3], 4
      %s22 = int_to_ptr.vmem [resolvable:$true] %s21
      %24 = dma.hbm_to_vmem [thread:$0]  %s0, 32, %s22, [#allocation4]
    $region5: #{tpu_custom_call.1} parent=1 // pred_fallthru
      _
    // Predicated region
    $region6: #{tpu_custom_call.1} parent=1 // pred_check
      _
    $region7: #{tpu_custom_call.1} parent=1 // pred_check_branch
      %26 = sbr.rel (0) target = $region9
    $region8: #{tpu_custom_call.1} parent=1 // pred_region
      %s28 = ssub.s32 2048, 2048
      %29 = vsyncadd [#allocation7], %s28
      %s30 = sshll.u32 [#allocation6], 4
      %s31 = int_to_ptr.vmem [resolvable:$true] %s30
      %36 = dma.hbm_to_vmem [thread:$0]  %s1, 2048, %s31, [#allocation7], 128, 128, 8
    $region9: #{tpu_custom_call.1} parent=1 // pred_fallthru
      _
    // Predicated region
    $region10: #{tpu_custom_call.1} parent=1 // pred_check
      _
    $region11: #{tpu_custom_call.1} parent=1 // pred_check_branch
      %38 = sbr.rel (0) target = $region13
    $region12: #{tpu_custom_call.1} parent=1 // pred_region
      _
    $region13: #{tpu_custom_call.1} parent=1 // pred_fallthru
      _
    // Predicated region
    $region14: #{tpu_custom_call.1} parent=1 // pred_check
      _
    $region15: #{tpu_custom_call.1} parent=1 // pred_check_branch
      %40 = sbr.rel (0) target = $region17
    $region16: #{tpu_custom_call.1} parent=1 // pred_region
      %s42 = ssub.s32 2048, 2048
      %43 = vsyncadd [#allocation7], %s42
      %s44 = sshll.u32 [#allocation8], 4
      %s45 = int_to_ptr.vmem [resolvable:$true] %s44
      %50 = dma.hbm_to_vmem [thread:$0]  %s3, 2048, %s45, [#allocation7], 128, 128, 8
    $region17: #{tpu_custom_call.1} parent=1 // pred_fallthru
      _
    // Predicated region
    $region18: #{tpu_custom_call.1} parent=1 // pred_check
      _
    $region19: #{tpu_custom_call.1} parent=1 // pred_check_branch
      %52 = sbr.rel (0) target = $region21
    $region20: #{tpu_custom_call.1} parent=1 // pred_region
      _
    $region21: #{tpu_custom_call.1} parent=1 // pred_fallthru
      _
    // Predicated region
    $region22: #{tpu_custom_call.1} parent=1 // pred_check
      _
    $region23: #{tpu_custom_call.1} parent=1 // pred_check_branch
      %54 = sbr.rel (0) target = $region25
    $region24: #{tpu_custom_call.1} parent=1 // pred_region
      %s56 = ssub.s32 256, 256
      %57 = vsyncadd [#allocation10], %s56
      %s58 = sshll.u32 [#allocation9], 4
      %s59 = int_to_ptr.vmem [resolvable:$true] %s58
      %64 = dma.hbm_to_vmem [thread:$0]  %s5, 256, %s59, [#allocation10], 128, 128, 8
    $region25: #{tpu_custom_call.1} parent=1 // pred_fallthru
      _
    // Predicated region
    $region26: #{tpu_custom_call.1} parent=1 // pred_check
      _
    $region27: #{tpu_custom_call.1} parent=1 // pred_check_branch
      %66 = sbr.rel (0) target = $region29
    $region28: #{tpu_custom_call.1} parent=1 // pred_region
      %67 = dma.done [#allocation4], 32
    $region29: #{tpu_custom_call.1} parent=1 // pred_fallthru
      _
    // Predicated region
    $region30: #{tpu_custom_call.1} parent=1 // pred_check
      _
    $region31: #{tpu_custom_call.1} parent=1 // pred_check_branch
      %69 = sbr.rel (0) target = $region33
    $region32: #{tpu_custom_call.1} parent=1 // pred_region
      %70 = dma.done [#allocation7], 2048
    $region33: #{tpu_custom_call.1} parent=1 // pred_fallthru
      _
    // Predicated region
    $region34: #{tpu_custom_call.1} parent=1 // pred_check
      _
    $region35: #{tpu_custom_call.1} parent=1 // pred_check_branch
      %72 = sbr.rel (0) target = $region37
    $region36: #{tpu_custom_call.1} parent=1 // pred_region
      %73 = dma.done [#allocation7], 2048
    $region37: #{tpu_custom_call.1} parent=1 // pred_fallthru
      _
    // Predicated region
    $region38: #{tpu_custom_call.1} parent=1 // pred_check
      _
    $region39: #{tpu_custom_call.1} parent=1 // pred_check_branch
      %75 = sbr.rel (0) target = $region41
    $region40: #{tpu_custom_call.1} parent=1 // pred_region
      %76 = dma.done [#allocation10], 256
    $region41: #{tpu_custom_call.1} parent=1 // pred_fallthru
      _
    %p77 = scmp.eq.s32.totalorder 0, 0
    // Predicated region
    $region42: #{tpu_custom_call.1} parent=1 // pred_check
      %p78 = pneg %p77
    $region43: #{tpu_custom_call.1} parent=1 // pred_check_branch
      %80 = sbr.rel (%p78) target = $region45
    $region44: #{tpu_custom_call.1} parent=1 // pred_region
      %81 = vst [vmem:[#allocation2] sm:$0x1] 0.0
    $region45: #{tpu_custom_call.1} parent=1 // pred_fallthru
      _
    %v82 = vld [vmem:[#allocation3] sm:$0x3]
    %v83 = vld [vmem:[#allocation6] sm:$0xff]
    %v84 = vld [vmem:[#allocation6 + $0x8] sm:$0xff]
    %v85 = vld [vmem:[#allocation6 + $0x10] sm:$0xff]
    %v86 = vld [vmem:[#allocation6 + $0x18] sm:$0xff]
    %v87 = vld [vmem:[#allocation6 + $0x20] sm:$0xff]
    %v88 = vld [vmem:[#allocation6 + $0x28] sm:$0xff]
    %v89 = vld [vmem:[#allocation6 + $0x30] sm:$0xff]
    %v90 = vld [vmem:[#allocation6 + $0x38] sm:$0xff]
    %v91 = vld [vmem:[#allocation6 + $0x40] sm:$0xff]
    %v92 = vld [vmem:[#allocation6 + $0x48] sm:$0xff]
    %v93 = vld [vmem:[#allocation6 + $0x50] sm:$0xff]
    %v94 = vld [vmem:[#allocation6 + $0x58] sm:$0xff]
    %v95 = vld [vmem:[#allocation6 + $0x60] sm:$0xff]
    %v96 = vld [vmem:[#allocation6 + $0x68] sm:$0xff]
    %v97 = vld [vmem:[#allocation6 + $0x70] sm:$0xff]
    %v98 = vld [vmem:[#allocation6 + $0x78] sm:$0xff]
    %v99 = vld [vmem:[%s2] sm:$0x1]
    %v101 = vlaneseq
    %v102 = vshrl.u32 %v101, 7
    %v103 = vsub.s32 0, %v102
    %v104 = vrot.slane %v99, %v103
    %106 = vmatprep.subr.mxu0 0.0
    %107 = vmatpush1.msra.mxu0 %v98
    %108 = vmatprep.subr.mxu0 0.0
    %109 = vmatpush1.msra.mxu0 %v97
    %110 = vmatprep.subr.mxu0 0.0
    %111 = vmatpush1.msra.mxu0 %v96
    %112 = vmatprep.subr.mxu0 0.0
    %113 = vmatpush1.msra.mxu0 %v95
    %114 = vmatprep.subr.mxu0 0.0
    %115 = vmatpush1.msra.mxu0 %v94
    %116 = vmatprep.subr.mxu0 0.0
    %117 = vmatpush1.msra.mxu0 %v93
    %118 = vmatprep.subr.mxu0 0.0
    %119 = vmatpush1.msra.mxu0 %v92
    %120 = vmatprep.subr.mxu0 0.0
    %121 = vmatpush1.msra.mxu0 %v91
    %122 = vmatprep.subr.mxu0 0.0
    %123 = vmatpush1.msra.mxu0 %v90
    %124 = vmatprep.subr.mxu0 0.0
    %125 = vmatpush1.msra.mxu0 %v89
    %126 = vmatprep.subr.mxu0 0.0
    %127 = vmatpush1.msra.mxu0 %v88
    %128 = vmatprep.subr.mxu0 0.0
    %129 = vmatpush1.msra.mxu0 %v87
    %130 = vmatprep.subr.mxu0 0.0
    %131 = vmatpush1.msra.mxu0 %v86
    %132 = vmatprep.subr.mxu0 0.0
    %133 = vmatpush1.msra.mxu0 %v85
    %134 = vmatprep.subr.mxu0 0.0
    %135 = vmatpush1.msra.mxu0 %v84
    %136 = vmatprep.subr.mxu0 0.0
    %137 = vmatpush1.msra.mxu0 %v83
    %138 = vmatprep.subr.mxu0 0.0
    %139 = vmatpush2.msra.mxu0 0.0
    %140 = vmatprep.subr.mxu0 0.0
    %141 = vmatpush2.msra.mxu0 0.0
    %142 = vmatprep.subr.mxu0 0.0
    %143 = vmatpush2.msra.mxu0 0.0
    %144 = vmatprep.subr.mxu0 0.0
    %145 = vmatpush2.msra.mxu0 0.0
    %146 = vmatprep.subr.mxu0 0.0
    %147 = vmatpush2.msra.mxu0 0.0
    %148 = vmatprep.subr.mxu0 0.0
    %149 = vmatpush2.msra.mxu0 0.0
    %150 = vmatprep.subr.mxu0 0.0
    %151 = vmatpush2.msra.mxu0 0.0
    %152 = vmatprep.subr.mxu0 0.0
    %153 = vmatpush2.msra.mxu0 0.0
    %154 = vmatprep.subr.mxu0 0.0
    %155 = vmatpush2.msra.mxu0 0.0
    %156 = vmatprep.subr.mxu0 0.0
    %157 = vmatpush2.msra.mxu0 0.0
    %158 = vmatprep.subr.mxu0 0.0
    %159 = vmatpush2.msra.mxu0 0.0
    %160 = vmatprep.subr.mxu0 0.0
    %161 = vmatpush2.msra.mxu0 0.0
    %162 = vmatprep.subr.mxu0 0.0
    %163 = vmatpush2.msra.mxu0 0.0
    %164 = vmatprep.subr.mxu0 0.0
    %165 = vmatpush2.msra.mxu0 0.0
    %166 = vmatprep.subr.mxu0 0.0
    %167 = vmatpush2.msra.mxu0 0.0
    %168 = vmatprep.subr.mxu0 0.0
    %169 = vmatpush2.msra.mxu0 0.0
    %170 = vmatprep.mubr.f32.mxu0 0.0
    %171 = vmatmul.mubr.f32.gmra.mxu0 %v82
    %v172 = vpop.f32.mrf.mxu0
    %v173 = vadd.f32 %v104, %v172
    %v174 = vpop.f32.mrf.mxu0
    %175 = vdwg.mxu0
    %v176 = vxor.u32 %v173, 2147483648
    %v177 = vmul.f32 %v176, 1.442695
    %v178 = vpow.pop %v177
    %v179 = vadd.f32 %v178, 1.0
    %v180 = vrcp.pop %v179
    %v181 = vmul.f32 1.0, %v180
    %v182 = vmax.f32 %v173, 0.0
    %v183 = vlaneseq
    %v184 = vand.u32 %v183, 127
    %vm185 = vcmp.eq.s32.totalorder %v184, 32
    %v186 = vsel %vm185, 1, 0
    %vm187 = vcmp.eq.s32.totalorder %v186, 1
    %v188 = vsel %vm187, 1.0, %v182
    %v189 = vld [vmem:[#allocation2] sm:$0x1]
    %191 = vset.pattern.permute.xlu0 32
    %192 = vperm.xlu0 %191, %v181
    %v193 = vpop.permute.xlu0 %192
    %v195 = vmul.f32 %v193, %v188
    %vm196 = vcmask 1041408
    %v197 = vsel %vm196, %v195, 0.0
    %v198 = vrot.slane %v197, 4
    %v199 = vadd.f32 %v197, %v198
    %v200 = vrot.slane %v199, 2
    %v201 = vadd.f32 %v199, %v200
    %v202 = vrot.slane %v201, 1
    %v203 = vadd.f32 %v201, %v202
    %v204 = vadd.f32 %v189, %v203
    %205 = vst [vmem:[#allocation2] sm:$0x1] %v204
    // Predicated region
    $region46: #{tpu_custom_call.1} parent=1 // pred_check
      %p206 = pneg %p77
    $region47: #{tpu_custom_call.1} parent=1 // pred_check_branch
      %208 = sbr.rel (%p206) target = $region49
    $region48: #{tpu_custom_call.1} parent=1 // pred_region
      %v209 = vld [vmem:[#allocation2] sm:$0x1]
      %v210 = vld [vmem:[#allocation8] sm:$0xff]
      %v211 = vld [vmem:[#allocation8 + $0x8] sm:$0xff]
      %v212 = vld [vmem:[#allocation8 + $0x10] sm:$0xff]
      %v213 = vld [vmem:[#allocation8 + $0x18] sm:$0xff]
      %v214 = vld [vmem:[#allocation8 + $0x20] sm:$0xff]
      %v215 = vld [vmem:[#allocation8 + $0x28] sm:$0xff]
      %v216 = vld [vmem:[#allocation8 + $0x30] sm:$0xff]
      %v217 = vld [vmem:[#allocation8 + $0x38] sm:$0xff]
      %v218 = vld [vmem:[#allocation8 + $0x40] sm:$0xff]
      %v219 = vld [vmem:[#allocation8 + $0x48] sm:$0xff]
      %v220 = vld [vmem:[#allocation8 + $0x50] sm:$0xff]
      %v221 = vld [vmem:[#allocation8 + $0x58] sm:$0xff]
      %v222 = vld [vmem:[#allocation8 + $0x60] sm:$0xff]
      %v223 = vld [vmem:[#allocation8 + $0x68] sm:$0xff]
      %v224 = vld [vmem:[#allocation8 + $0x70] sm:$0xff]
      %v225 = vld [vmem:[#allocation8 + $0x78] sm:$0xff]
      %v226 = vld [vmem:[%s4] sm:$0x1]
      %228 = vset.pattern.permute.xlu0 32
      %229 = vperm.xlu0 %228, %v209
      %v230 = vpop.permute.xlu0 %229
      %v232 = vlaneseq
      %v233 = vshrl.u32 %v232, 7
      %v234 = vsub.s32 0, %v233
      %v235 = vrot.slane %v230, %v234
      %v236 = vmul.f32 %v235, %v226
      %237 = vmatprep.subr.mxu0 0.0
      %238 = vmatpush1.msra.mxu0 %v225
      %239 = vmatprep.subr.mxu0 0.0
      %240 = vmatpush1.msra.mxu0 %v224
      %241 = vmatprep.subr.mxu0 0.0
      %242 = vmatpush1.msra.mxu0 %v223
      %243 = vmatprep.subr.mxu0 0.0
      %244 = vmatpush1.msra.mxu0 %v222
      %245 = vmatprep.subr.mxu0 0.0
      %246 = vmatpush1.msra.mxu0 %v221
      %247 = vmatprep.subr.mxu0 0.0
      %248 = vmatpush1.msra.mxu0 %v220
      %249 = vmatprep.subr.mxu0 0.0
      %250 = vmatpush1.msra.mxu0 %v219
      %251 = vmatprep.subr.mxu0 0.0
      %252 = vmatpush1.msra.mxu0 %v218
      %253 = vmatprep.subr.mxu0 0.0
      %254 = vmatpush1.msra.mxu0 %v217
      %255 = vmatprep.subr.mxu0 0.0
      %256 = vmatpush1.msra.mxu0 %v216
      %257 = vmatprep.subr.mxu0 0.0
      %258 = vmatpush1.msra.mxu0 %v215
      %259 = vmatprep.subr.mxu0 0.0
      %260 = vmatpush1.msra.mxu0 %v214
      %261 = vmatprep.subr.mxu0 0.0
      %262 = vmatpush1.msra.mxu0 %v213
      %263 = vmatprep.subr.mxu0 0.0
      %264 = vmatpush1.msra.mxu0 %v212
      %265 = vmatprep.subr.mxu0 0.0
      %266 = vmatpush1.msra.mxu0 %v211
      %267 = vmatprep.subr.mxu0 0.0
      %268 = vmatpush1.msra.mxu0 %v210
      %269 = vmatprep.subr.mxu0 0.0
      %270 = vmatpush2.msra.mxu0 0.0
      %271 = vmatprep.subr.mxu0 0.0
      %272 = vmatpush2.msra.mxu0 0.0
      %273 = vmatprep.subr.mxu0 0.0
      %274 = vmatpush2.msra.mxu0 0.0
      %275 = vmatprep.subr.mxu0 0.0
      %276 = vmatpush2.msra.mxu0 0.0
      %277 = vmatprep.subr.mxu0 0.0
      %278 = vmatpush2.msra.mxu0 0.0
      %279 = vmatprep.subr.mxu0 0.0
      %280 = vmatpush2.msra.mxu0 0.0
      %281 = vmatprep.subr.mxu0 0.0
      %282 = vmatpush2.msra.mxu0 0.0
      %283 = vmatprep.subr.mxu0 0.0
      %284 = vmatpush2.msra.mxu0 0.0
      %285 = vmatprep.subr.mxu0 0.0
      %286 = vmatpush2.msra.mxu0 0.0
      %287 = vmatprep.subr.mxu0 0.0
      %288 = vmatpush2.msra.mxu0 0.0
      %289 = vmatprep.subr.mxu0 0.0
      %290 = vmatpush2.msra.mxu0 0.0
      %291 = vmatprep.subr.mxu0 0.0
      %292 = vmatpush2.msra.mxu0 0.0
      %293 = vmatprep.subr.mxu0 0.0
      %294 = vmatpush2.msra.mxu0 0.0
      %295 = vmatprep.subr.mxu0 0.0
      %296 = vmatpush2.msra.mxu0 0.0
      %297 = vmatprep.subr.mxu0 0.0
      %298 = vmatpush2.msra.mxu0 0.0
      %299 = vmatprep.subr.mxu0 0.0
      %300 = vmatpush2.msra.mxu0 0.0
      %301 = vmatprep.mubr.f32.mxu0 0.0
      %302 = vmatmul.mubr.f32.gmra.mxu0 %v209
      %v303 = vpop.f32.mrf.mxu0
      %v304 = vadd.f32 %v236, %v303
      %v305 = vpop.f32.mrf.mxu0
      %306 = vdwg.mxu0
      %v307 = vmul.f32 %v304, 0.5
      %v308 = vmul.f32 %v209, 0.5
      %v309 = vsub.f32 1.0, %v308
      %v310 = vld [vmem:[#allocation9] sm:$0xff]
      %v311 = vld [vmem:[#allocation9 + $0x8] sm:$0xff]
      %v313 = vlaneseq
      %v314 = vshrl.u32 %v313, 7
      %v315 = vsub.s32 0, %v314
      %v316 = vrot.slane %v309, %v315
      %317 = vset.pattern.permute.xlu0 32
      %318 = vperm.xlu0 %317, %v316
      %v319 = vpop.permute.xlu0 %318
      %v321 = vmul.f32 %v319, %v310
      %v322 = vmul.f32 %v319, %v311
      %v323 = vlaneseq
      %v324 = vshrl.u32 %v323, 7
      %v325 = vsub.s32 0, %v324
      %v326 = vrot.slane %v307, %v325
      %v327 = vadd.f32 %v326, %v321
      %v328 = vadd.f32 %v326, %v322
      %329 = vst [vmem:[#allocation11] sm:$0xff] %v327
      %330 = vst [vmem:[#allocation11 + $0x8] sm:$0xff] %v328
    $region49: #{tpu_custom_call.1} parent=1 // pred_fallthru
      _
    // Predicated region
    $region50: #{tpu_custom_call.1} parent=1 // pred_check
      _
    $region51: #{tpu_custom_call.1} parent=1 // pred_check_branch
      %332 = sbr.rel (0) target = $region53
    $region52: #{tpu_custom_call.1} parent=1 // pred_region
      %s334 = ssub.s32 256, 256
      %335 = vsyncadd [#allocation5], %s334
      %s336 = sshll.u32 [#allocation11], 4
      %s337 = int_to_ptr.vmem [resolvable:$true] %s336
      %342 = dma.vmem_to_hbm [thread:$0]  %s337, 256, %s6, [#allocation5], 128, 128, 8
    $region53: #{tpu_custom_call.1} parent=1 // pred_fallthru
      _
    // Predicated region
    $region54: #{tpu_custom_call.1} parent=1 // pred_check
      _
    $region55: #{tpu_custom_call.1} parent=1 // pred_check_branch
      %344 = sbr.rel (0) target = $region57
    $region56: #{tpu_custom_call.1} parent=1 // pred_region
      %345 = dma.done [#allocation5], 256
    $region57: #{tpu_custom_call.1} parent=1 // pred_fallthru
      _
    %346 = vsyncpa [#allocation4], 1
    %347 = vsyncpa [#allocation7], 1
    %348 = vsyncpa [#allocation10], 1
    %349 = vsyncpa [#allocation5], 1

</llo_original>
